<compile_context>
chip_gen: v5e
topology: v5e:2x2
jax: 0.10.0
libtpu: 0.0.40
codegen_flags: <defaults>
</compile_context>

<pallas_src>
import jax
import jax.numpy as jnp
from jax.experimental import pallas as pl
from jax.experimental.pallas import tpu as pltpu

FEA_DIM = 1
HIDDEN = 32
NUM_LAYERS = 1
PRED_SEQ = 24


def lstm_trend_kernel(x_ref, wih_ref, whh_ref, b_ref, wfc_ref, bfc_ref, out_ref):
    # x_ref  : (T*Bp, F)   time-major input, batch padded to Bp (multiple of 8)
    # wih_ref: (F, 4H)     gate-permuted (i,f,o,g) W_ih^T
    # whh_ref: (H, 4H)     gate-permuted W_hh^T
    # b_ref  : (1, 4H)     gate-permuted b_ih + b_hh
    # wfc_ref: (H, P*F)    fc_1.weight^T
    # bfc_ref: (1, P*F)    fc_1.bias
    # out_ref: (Bp, P*F)
    Bp = out_ref.shape[0]
    TB, _ = x_ref.shape
    T = TB // Bp
    H = whh_ref.shape[0]

    # Hoisted input projection + fused bias: one lane-dense (T*Bp, 4H) slab.
    gx = (jnp.dot(x_ref[...], wih_ref[...], preferred_element_type=jnp.float32)
          + b_ref[...])

    whh = whh_ref[...]                                   # load recurrent weight once
    h = jnp.zeros((Bp, H), jnp.float32)
    c = jnp.zeros((Bp, H), jnp.float32)

    # Fully-unrolled recurrence; h/c live in vregs, no scratch round-trips.
    for t in range(T):
        gates = gx[t * Bp:(t + 1) * Bp, :] + jnp.dot(
            h, whh, preferred_element_type=jnp.float32)  # (Bp, 4H), 4H = 128
        sig = jax.nn.sigmoid(gates[:, :3 * H])            # i | f | o  (one EUP pass)
        g_g = jnp.tanh(gates[:, 3 * H:])                  # g          (one EUP pass)
        i_g = sig[:, :H]
        f_g = sig[:, H:2 * H]
        o_g = sig[:, 2 * H:3 * H]
        c = f_g * c + i_g * g_g
        h = o_g * jnp.tanh(c)

    # fc_1 applied to the final hidden state hn.
    out_ref[...] = (jnp.dot(h, wfc_ref[...], preferred_element_type=jnp.float32)
                    + bfc_ref[...])


def lstm_trend_forward(x, params):
    """x: (B, T, FEA_DIM) float32, batch_first like the PyTorch module."""
    B, T, F = x.shape
    assert F == FEA_DIM
    H = HIDDEN

    # Pad batch to sublane width (multiple of 8); padded rows are zeros.
    Bp = max(8, ((B + 7) // 8) * 8)
    x_tm = jnp.transpose(x, (1, 0, 2)).astype(jnp.float32)            # (T, B, F)
    x_tm = jnp.pad(x_tm, ((0, 0), (0, Bp - B), (0, 0)))               # (T, Bp, F)
    x2d = x_tm.reshape(T * Bp, F)                                     # (T*Bp, F)

    # Permute gate blocks from PyTorch order (i,f,g,o) to (i,f,o,g) so the
    # kernel can use one wide sigmoid + one tanh.  Applied identically to
    # W_ih, W_hh and the fused bias.
    perm = jnp.concatenate([jnp.arange(0, H), jnp.arange(H, 2 * H),
                            jnp.arange(3 * H, 4 * H), jnp.arange(2 * H, 3 * H)])
    wih_t = params["w_ih"][perm].T                                    # (F, 4H)
    whh_t = params["w_hh"][perm].T                                    # (H, 4H)
    b = (params["b_ih"] + params["b_hh"])[perm].reshape(1, -1)        # (1, 4H)
    wfc_t = params["w_fc"].T                                          # (H, P*F)
    bfc = params["b_fc"].reshape(1, -1)                               # (1, P*F)
    pf = wfc_t.shape[1]

    vmem = pl.BlockSpec(memory_space=pltpu.MemorySpace.VMEM)
    out = pl.pallas_call(
        lstm_trend_kernel,
        out_shape=jax.ShapeDtypeStruct((Bp, pf), jnp.float32),
        in_specs=[vmem] * 6,
        out_specs=vmem,
    )(x2d, wih_t, whh_t, b, wfc_t, bfc)

    # TODO(synk): for large production batches, add a batch-tiled grid with
    # dimension_semantics=("parallel",) so v7x's two TensorCores split B.
    return out[:B].reshape(B, PRED_SEQ, FEA_DIM)


def init_params(key):
    """Deterministic init mirroring PyTorch's U(-1/sqrt(H), 1/sqrt(H))."""
    k = 1.0 / jnp.sqrt(jnp.float32(HIDDEN))
    keys = jax.random.split(key, 6)
    u = lambda kk, shape: jax.random.uniform(kk, shape, jnp.float32, -k, k)
    return {
        "w_ih": u(keys[0], (4 * HIDDEN, FEA_DIM)),     # PyTorch gate order i,f,g,o
        "w_hh": u(keys[1], (4 * HIDDEN, HIDDEN)),
        "b_ih": u(keys[2], (4 * HIDDEN,)),
        "b_hh": u(keys[3], (4 * HIDDEN,)),
        "w_fc": u(keys[4], (PRED_SEQ * FEA_DIM, HIDDEN)),
        "b_fc": u(keys[5], (PRED_SEQ * FEA_DIM,)),
    }


def lstm_trend_reference(x, params):
    """Pure-JAX reference of the same forward pass (PyTorch gate order)."""
    B, T, F = x.shape
    H = HIDDEN
    h = jnp.zeros((B, H), jnp.float32)
    c = jnp.zeros((B, H), jnp.float32)
    b = params["b_ih"] + params["b_hh"]
    for t in range(T):
        gates = x[:, t, :] @ params["w_ih"].T + h @ params["w_hh"].T + b
        i_g = jax.nn.sigmoid(gates[:, 0 * H:1 * H])
        f_g = jax.nn.sigmoid(gates[:, 1 * H:2 * H])
        g_g = jnp.tanh(gates[:, 2 * H:3 * H])
        o_g = jax.nn.sigmoid(gates[:, 3 * H:4 * H])
        c = f_g * c + i_g * g_g
        h = o_g * jnp.tanh(c)
    out = h @ params["w_fc"].T + params["b_fc"]
    return out.reshape(B, PRED_SEQ, FEA_DIM)


if __name__ == "__main__":
    key = jax.random.PRNGKey(0)
    pkey, xkey = jax.random.split(key)
    params = init_params(pkey)

    B, T = 2, 8
    x = jax.random.normal(xkey, (B, T, FEA_DIM), jnp.float32)

    out = lstm_trend_forward(x, params)
    out = jax.block_until_ready(out)

    ref = jax.block_until_ready(lstm_trend_reference(x, params))
    assert out.shape == (B, PRED_SEQ, FEA_DIM)
    assert jnp.allclose(out, ref, atol=1e-5, rtol=1e-5), "mismatch vs reference"

    print("KERNEL_OK")
</pallas_src>

<mosaic_0001>
module attributes {stable_mosaic.version = 11 : i64} {
  func.func @lstm_trend_kernel(%arg0: memref<64x1xf32, #tpu.memory_space<vmem>>, %arg1: memref<1x128xf32, #tpu.memory_space<vmem>>, %arg2: memref<32x128xf32, #tpu.memory_space<vmem>>, %arg3: memref<1x128xf32, #tpu.memory_space<vmem>>, %arg4: memref<32x24xf32, #tpu.memory_space<vmem>>, %arg5: memref<1x24xf32, #tpu.memory_space<vmem>>, %arg6: memref<8x24xf32, #tpu.memory_space<vmem>>) attributes {dimension_semantics = [], scalar_prefetch = 0 : i64, scratch_operands = 0 : i64, tpu.core_type = #tpu.core_type<tc>} {
    %c0 = arith.constant 0 : index
    %c0_0 = arith.constant 0 : index
    %0 = vector.load %arg0[%c0, %c0_0] : memref<64x1xf32, #tpu.memory_space<vmem>>, vector<64x1xf32>
    %c0_1 = arith.constant 0 : index
    %c0_2 = arith.constant 0 : index
    %1 = vector.load %arg1[%c0_1, %c0_2] : memref<1x128xf32, #tpu.memory_space<vmem>>, vector<1x128xf32>
    %cst = arith.constant dense<0.000000e+00> : vector<64x128xf32>
    %2 = tpu.matmul %0, %1, %cst {dimension_numbers = #tpu.dot_dimension_numbers<[1], [0], [0], [1], [0, 0, 1, 1], [], []>} : vector<64x1xf32>, vector<1x128xf32>, vector<64x128xf32> -> vector<64x128xf32>
    %c0_3 = arith.constant 0 : index
    %c0_4 = arith.constant 0 : index
    %3 = vector.load %arg3[%c0_3, %c0_4] : memref<1x128xf32, #tpu.memory_space<vmem>>, vector<1x128xf32>
    %4 = vector.broadcast %3 : vector<1x128xf32> to vector<64x128xf32>
    %5 = arith.addf %2, %4 : vector<64x128xf32>
    %c0_5 = arith.constant 0 : index
    %c0_6 = arith.constant 0 : index
    %6 = vector.load %arg2[%c0_5, %c0_6] : memref<32x128xf32, #tpu.memory_space<vmem>>, vector<32x128xf32>
    %cst_7 = arith.constant 0.000000e+00 : f32
    %7 = vector.broadcast %cst_7 : f32 to vector<8x32xf32>
    %cst_8 = arith.constant 0.000000e+00 : f32
    %8 = vector.broadcast %cst_8 : f32 to vector<8x32xf32>
    %9 = vector.extract_strided_slice %5 {offsets = [0, 0], sizes = [8, 128], strides = [1, 1]} : vector<64x128xf32> to vector<8x128xf32>
    %cst_9 = arith.constant dense<0.000000e+00> : vector<8x128xf32>
    %10 = tpu.matmul %7, %6, %cst_9 {dimension_numbers = #tpu.dot_dimension_numbers<[1], [0], [0], [1], [0, 0, 1, 1], [], []>} : vector<8x32xf32>, vector<32x128xf32>, vector<8x128xf32> -> vector<8x128xf32>
    %11 = arith.addf %9, %10 : vector<8x128xf32>
    %12 = vector.extract_strided_slice %11 {offsets = [0, 0], sizes = [8, 96], strides = [1, 1]} : vector<8x128xf32> to vector<8x96xf32>
    %13 = arith.negf %12 : vector<8x96xf32>
    %14 = math.exp %13 : vector<8x96xf32>
    %cst_10 = arith.constant 1.000000e+00 : f32
    %15 = vector.broadcast %cst_10 : f32 to vector<8x96xf32>
    %16 = arith.addf %15, %14 : vector<8x96xf32>
    %17 = arith.divf %15, %16 : vector<8x96xf32>
    %18 = vector.extract_strided_slice %11 {offsets = [0, 96], sizes = [8, 32], strides = [1, 1]} : vector<8x128xf32> to vector<8x32xf32>
    %19 = math.tanh %18 : vector<8x32xf32>
    %20 = vector.extract_strided_slice %17 {offsets = [0, 0], sizes = [8, 32], strides = [1, 1]} : vector<8x96xf32> to vector<8x32xf32>
    %21 = vector.extract_strided_slice %17 {offsets = [0, 32], sizes = [8, 32], strides = [1, 1]} : vector<8x96xf32> to vector<8x32xf32>
    %22 = vector.extract_strided_slice %17 {offsets = [0, 64], sizes = [8, 32], strides = [1, 1]} : vector<8x96xf32> to vector<8x32xf32>
    %23 = arith.mulf %21, %8 : vector<8x32xf32>
    %24 = arith.mulf %20, %19 : vector<8x32xf32>
    %25 = arith.addf %23, %24 : vector<8x32xf32>
    %26 = math.tanh %25 : vector<8x32xf32>
    %27 = arith.mulf %22, %26 : vector<8x32xf32>
    %28 = vector.extract_strided_slice %5 {offsets = [8, 0], sizes = [8, 128], strides = [1, 1]} : vector<64x128xf32> to vector<8x128xf32>
    %cst_11 = arith.constant dense<0.000000e+00> : vector<8x128xf32>
    %29 = tpu.matmul %27, %6, %cst_11 {dimension_numbers = #tpu.dot_dimension_numbers<[1], [0], [0], [1], [0, 0, 1, 1], [], []>} : vector<8x32xf32>, vector<32x128xf32>, vector<8x128xf32> -> vector<8x128xf32>
    %30 = arith.addf %28, %29 : vector<8x128xf32>
    %31 = vector.extract_strided_slice %30 {offsets = [0, 0], sizes = [8, 96], strides = [1, 1]} : vector<8x128xf32> to vector<8x96xf32>
    %32 = arith.negf %31 : vector<8x96xf32>
    %33 = math.exp %32 : vector<8x96xf32>
    %cst_12 = arith.constant 1.000000e+00 : f32
    %34 = vector.broadcast %cst_12 : f32 to vector<8x96xf32>
    %35 = arith.addf %34, %33 : vector<8x96xf32>
    %36 = arith.divf %34, %35 : vector<8x96xf32>
    %37 = vector.extract_strided_slice %30 {offsets = [0, 96], sizes = [8, 32], strides = [1, 1]} : vector<8x128xf32> to vector<8x32xf32>
    %38 = math.tanh %37 : vector<8x32xf32>
    %39 = vector.extract_strided_slice %36 {offsets = [0, 0], sizes = [8, 32], strides = [1, 1]} : vector<8x96xf32> to vector<8x32xf32>
    %40 = vector.extract_strided_slice %36 {offsets = [0, 32], sizes = [8, 32], strides = [1, 1]} : vector<8x96xf32> to vector<8x32xf32>
    %41 = vector.extract_strided_slice %36 {offsets = [0, 64], sizes = [8, 32], strides = [1, 1]} : vector<8x96xf32> to vector<8x32xf32>
    %42 = arith.mulf %40, %25 : vector<8x32xf32>
    %43 = arith.mulf %39, %38 : vector<8x32xf32>
    %44 = arith.addf %42, %43 : vector<8x32xf32>
    %45 = math.tanh %44 : vector<8x32xf32>
    %46 = arith.mulf %41, %45 : vector<8x32xf32>
    %47 = vector.extract_strided_slice %5 {offsets = [16, 0], sizes = [8, 128], strides = [1, 1]} : vector<64x128xf32> to vector<8x128xf32>
    %cst_13 = arith.constant dense<0.000000e+00> : vector<8x128xf32>
    %48 = tpu.matmul %46, %6, %cst_13 {dimension_numbers = #tpu.dot_dimension_numbers<[1], [0], [0], [1], [0, 0, 1, 1], [], []>} : vector<8x32xf32>, vector<32x128xf32>, vector<8x128xf32> -> vector<8x128xf32>
    %49 = arith.addf %47, %48 : vector<8x128xf32>
    %50 = vector.extract_strided_slice %49 {offsets = [0, 0], sizes = [8, 96], strides = [1, 1]} : vector<8x128xf32> to vector<8x96xf32>
    %51 = arith.negf %50 : vector<8x96xf32>
    %52 = math.exp %51 : vector<8x96xf32>
    %cst_14 = arith.constant 1.000000e+00 : f32
    %53 = vector.broadcast %cst_14 : f32 to vector<8x96xf32>
    %54 = arith.addf %53, %52 : vector<8x96xf32>
    %55 = arith.divf %53, %54 : vector<8x96xf32>
    %56 = vector.extract_strided_slice %49 {offsets = [0, 96], sizes = [8, 32], strides = [1, 1]} : vector<8x128xf32> to vector<8x32xf32>
    %57 = math.tanh %56 : vector<8x32xf32>
    %58 = vector.extract_strided_slice %55 {offsets = [0, 0], sizes = [8, 32], strides = [1, 1]} : vector<8x96xf32> to vector<8x32xf32>
    %59 = vector.extract_strided_slice %55 {offsets = [0, 32], sizes = [8, 32], strides = [1, 1]} : vector<8x96xf32> to vector<8x32xf32>
    %60 = vector.extract_strided_slice %55 {offsets = [0, 64], sizes = [8, 32], strides = [1, 1]} : vector<8x96xf32> to vector<8x32xf32>
    %61 = arith.mulf %59, %44 : vector<8x32xf32>
    %62 = arith.mulf %58, %57 : vector<8x32xf32>
    %63 = arith.addf %61, %62 : vector<8x32xf32>
    %64 = math.tanh %63 : vector<8x32xf32>
    %65 = arith.mulf %60, %64 : vector<8x32xf32>
    %66 = vector.extract_strided_slice %5 {offsets = [24, 0], sizes = [8, 128], strides = [1, 1]} : vector<64x128xf32> to vector<8x128xf32>
    %cst_15 = arith.constant dense<0.000000e+00> : vector<8x128xf32>
    %67 = tpu.matmul %65, %6, %cst_15 {dimension_numbers = #tpu.dot_dimension_numbers<[1], [0], [0], [1], [0, 0, 1, 1], [], []>} : vector<8x32xf32>, vector<32x128xf32>, vector<8x128xf32> -> vector<8x128xf32>
    %68 = arith.addf %66, %67 : vector<8x128xf32>
    %69 = vector.extract_strided_slice %68 {offsets = [0, 0], sizes = [8, 96], strides = [1, 1]} : vector<8x128xf32> to vector<8x96xf32>
    %70 = arith.negf %69 : vector<8x96xf32>
    %71 = math.exp %70 : vector<8x96xf32>
    %cst_16 = arith.constant 1.000000e+00 : f32
    %72 = vector.broadcast %cst_16 : f32 to vector<8x96xf32>
    %73 = arith.addf %72, %71 : vector<8x96xf32>
    %74 = arith.divf %72, %73 : vector<8x96xf32>
    %75 = vector.extract_strided_slice %68 {offsets = [0, 96], sizes = [8, 32], strides = [1, 1]} : vector<8x128xf32> to vector<8x32xf32>
    %76 = math.tanh %75 : vector<8x32xf32>
    %77 = vector.extract_strided_slice %74 {offsets = [0, 0], sizes = [8, 32], strides = [1, 1]} : vector<8x96xf32> to vector<8x32xf32>
    %78 = vector.extract_strided_slice %74 {offsets = [0, 32], sizes = [8, 32], strides = [1, 1]} : vector<8x96xf32> to vector<8x32xf32>
    %79 = vector.extract_strided_slice %74 {offsets = [0, 64], sizes = [8, 32], strides = [1, 1]} : vector<8x96xf32> to vector<8x32xf32>
    %80 = arith.mulf %78, %63 : vector<8x32xf32>
    %81 = arith.mulf %77, %76 : vector<8x32xf32>
    %82 = arith.addf %80, %81 : vector<8x32xf32>
    %83 = math.tanh %82 : vector<8x32xf32>
    %84 = arith.mulf %79, %83 : vector<8x32xf32>
    %85 = vector.extract_strided_slice %5 {offsets = [32, 0], sizes = [8, 128], strides = [1, 1]} : vector<64x128xf32> to vector<8x128xf32>
    %cst_17 = arith.constant dense<0.000000e+00> : vector<8x128xf32>
    %86 = tpu.matmul %84, %6, %cst_17 {dimension_numbers = #tpu.dot_dimension_numbers<[1], [0], [0], [1], [0, 0, 1, 1], [], []>} : vector<8x32xf32>, vector<32x128xf32>, vector<8x128xf32> -> vector<8x128xf32>
    %87 = arith.addf %85, %86 : vector<8x128xf32>
    %88 = vector.extract_strided_slice %87 {offsets = [0, 0], sizes = [8, 96], strides = [1, 1]} : vector<8x128xf32> to vector<8x96xf32>
    %89 = arith.negf %88 : vector<8x96xf32>
    %90 = math.exp %89 : vector<8x96xf32>
    %cst_18 = arith.constant 1.000000e+00 : f32
    %91 = vector.broadcast %cst_18 : f32 to vector<8x96xf32>
    %92 = arith.addf %91, %90 : vector<8x96xf32>
    %93 = arith.divf %91, %92 : vector<8x96xf32>
    %94 = vector.extract_strided_slice %87 {offsets = [0, 96], sizes = [8, 32], strides = [1, 1]} : vector<8x128xf32> to vector<8x32xf32>
    %95 = math.tanh %94 : vector<8x32xf32>
    %96 = vector.extract_strided_slice %93 {offsets = [0, 0], sizes = [8, 32], strides = [1, 1]} : vector<8x96xf32> to vector<8x32xf32>
    %97 = vector.extract_strided_slice %93 {offsets = [0, 32], sizes = [8, 32], strides = [1, 1]} : vector<8x96xf32> to vector<8x32xf32>
    %98 = vector.extract_strided_slice %93 {offsets = [0, 64], sizes = [8, 32], strides = [1, 1]} : vector<8x96xf32> to vector<8x32xf32>
    %99 = arith.mulf %97, %82 : vector<8x32xf32>
    %100 = arith.mulf %96, %95 : vector<8x32xf32>
    %101 = arith.addf %99, %100 : vector<8x32xf32>
    %102 = math.tanh %101 : vector<8x32xf32>
    %103 = arith.mulf %98, %102 : vector<8x32xf32>
    %104 = vector.extract_strided_slice %5 {offsets = [40, 0], sizes = [8, 128], strides = [1, 1]} : vector<64x128xf32> to vector<8x128xf32>
    %cst_19 = arith.constant dense<0.000000e+00> : vector<8x128xf32>
    %105 = tpu.matmul %103, %6, %cst_19 {dimension_numbers = #tpu.dot_dimension_numbers<[1], [0], [0], [1], [0, 0, 1, 1], [], []>} : vector<8x32xf32>, vector<32x128xf32>, vector<8x128xf32> -> vector<8x128xf32>
    %106 = arith.addf %104, %105 : vector<8x128xf32>
    %107 = vector.extract_strided_slice %106 {offsets = [0, 0], sizes = [8, 96], strides = [1, 1]} : vector<8x128xf32> to vector<8x96xf32>
    %108 = arith.negf %107 : vector<8x96xf32>
    %109 = math.exp %108 : vector<8x96xf32>
    %cst_20 = arith.constant 1.000000e+00 : f32
    %110 = vector.broadcast %cst_20 : f32 to vector<8x96xf32>
    %111 = arith.addf %110, %109 : vector<8x96xf32>
    %112 = arith.divf %110, %111 : vector<8x96xf32>
    %113 = vector.extract_strided_slice %106 {offsets = [0, 96], sizes = [8, 32], strides = [1, 1]} : vector<8x128xf32> to vector<8x32xf32>
    %114 = math.tanh %113 : vector<8x32xf32>
    %115 = vector.extract_strided_slice %112 {offsets = [0, 0], sizes = [8, 32], strides = [1, 1]} : vector<8x96xf32> to vector<8x32xf32>
    %116 = vector.extract_strided_slice %112 {offsets = [0, 32], sizes = [8, 32], strides = [1, 1]} : vector<8x96xf32> to vector<8x32xf32>
    %117 = vector.extract_strided_slice %112 {offsets = [0, 64], sizes = [8, 32], strides = [1, 1]} : vector<8x96xf32> to vector<8x32xf32>
    %118 = arith.mulf %116, %101 : vector<8x32xf32>
    %119 = arith.mulf %115, %114 : vector<8x32xf32>
    %120 = arith.addf %118, %119 : vector<8x32xf32>
    %121 = math.tanh %120 : vector<8x32xf32>
    %122 = arith.mulf %117, %121 : vector<8x32xf32>
    %123 = vector.extract_strided_slice %5 {offsets = [48, 0], sizes = [8, 128], strides = [1, 1]} : vector<64x128xf32> to vector<8x128xf32>
    %cst_21 = arith.constant dense<0.000000e+00> : vector<8x128xf32>
    %124 = tpu.matmul %122, %6, %cst_21 {dimension_numbers = #tpu.dot_dimension_numbers<[1], [0], [0], [1], [0, 0, 1, 1], [], []>} : vector<8x32xf32>, vector<32x128xf32>, vector<8x128xf32> -> vector<8x128xf32>
    %125 = arith.addf %123, %124 : vector<8x128xf32>
    %126 = vector.extract_strided_slice %125 {offsets = [0, 0], sizes = [8, 96], strides = [1, 1]} : vector<8x128xf32> to vector<8x96xf32>
    %127 = arith.negf %126 : vector<8x96xf32>
    %128 = math.exp %127 : vector<8x96xf32>
    %cst_22 = arith.constant 1.000000e+00 : f32
    %129 = vector.broadcast %cst_22 : f32 to vector<8x96xf32>
    %130 = arith.addf %129, %128 : vector<8x96xf32>
    %131 = arith.divf %129, %130 : vector<8x96xf32>
    %132 = vector.extract_strided_slice %125 {offsets = [0, 96], sizes = [8, 32], strides = [1, 1]} : vector<8x128xf32> to vector<8x32xf32>
    %133 = math.tanh %132 : vector<8x32xf32>
    %134 = vector.extract_strided_slice %131 {offsets = [0, 0], sizes = [8, 32], strides = [1, 1]} : vector<8x96xf32> to vector<8x32xf32>
    %135 = vector.extract_strided_slice %131 {offsets = [0, 32], sizes = [8, 32], strides = [1, 1]} : vector<8x96xf32> to vector<8x32xf32>
    %136 = vector.extract_strided_slice %131 {offsets = [0, 64], sizes = [8, 32], strides = [1, 1]} : vector<8x96xf32> to vector<8x32xf32>
    %137 = arith.mulf %135, %120 : vector<8x32xf32>
    %138 = arith.mulf %134, %133 : vector<8x32xf32>
    %139 = arith.addf %137, %138 : vector<8x32xf32>
    %140 = math.tanh %139 : vector<8x32xf32>
    %141 = arith.mulf %136, %140 : vector<8x32xf32>
    %142 = vector.extract_strided_slice %5 {offsets = [56, 0], sizes = [8, 128], strides = [1, 1]} : vector<64x128xf32> to vector<8x128xf32>
    %cst_23 = arith.constant dense<0.000000e+00> : vector<8x128xf32>
    %143 = tpu.matmul %141, %6, %cst_23 {dimension_numbers = #tpu.dot_dimension_numbers<[1], [0], [0], [1], [0, 0, 1, 1], [], []>} : vector<8x32xf32>, vector<32x128xf32>, vector<8x128xf32> -> vector<8x128xf32>
    %144 = arith.addf %142, %143 : vector<8x128xf32>
    %145 = vector.extract_strided_slice %144 {offsets = [0, 0], sizes = [8, 96], strides = [1, 1]} : vector<8x128xf32> to vector<8x96xf32>
    %146 = arith.negf %145 : vector<8x96xf32>
    %147 = math.exp %146 : vector<8x96xf32>
    %cst_24 = arith.constant 1.000000e+00 : f32
    %148 = vector.broadcast %cst_24 : f32 to vector<8x96xf32>
    %149 = arith.addf %148, %147 : vector<8x96xf32>
    %150 = arith.divf %148, %149 : vector<8x96xf32>
    %151 = vector.extract_strided_slice %144 {offsets = [0, 96], sizes = [8, 32], strides = [1, 1]} : vector<8x128xf32> to vector<8x32xf32>
    %152 = math.tanh %151 : vector<8x32xf32>
    %153 = vector.extract_strided_slice %150 {offsets = [0, 0], sizes = [8, 32], strides = [1, 1]} : vector<8x96xf32> to vector<8x32xf32>
    %154 = vector.extract_strided_slice %150 {offsets = [0, 32], sizes = [8, 32], strides = [1, 1]} : vector<8x96xf32> to vector<8x32xf32>
    %155 = vector.extract_strided_slice %150 {offsets = [0, 64], sizes = [8, 32], strides = [1, 1]} : vector<8x96xf32> to vector<8x32xf32>
    %156 = arith.mulf %154, %139 : vector<8x32xf32>
    %157 = arith.mulf %153, %152 : vector<8x32xf32>
    %158 = arith.addf %156, %157 : vector<8x32xf32>
    %159 = math.tanh %158 : vector<8x32xf32>
    %160 = arith.mulf %155, %159 : vector<8x32xf32>
    %c0_25 = arith.constant 0 : index
    %c0_26 = arith.constant 0 : index
    %161 = vector.load %arg4[%c0_25, %c0_26] : memref<32x24xf32, #tpu.memory_space<vmem>>, vector<32x24xf32>
    %cst_27 = arith.constant dense<0.000000e+00> : vector<8x24xf32>
    %162 = tpu.matmul %160, %161, %cst_27 {dimension_numbers = #tpu.dot_dimension_numbers<[1], [0], [0], [1], [0, 0, 1, 1], [], []>} : vector<8x32xf32>, vector<32x24xf32>, vector<8x24xf32> -> vector<8x24xf32>
    %c0_28 = arith.constant 0 : index
    %c0_29 = arith.constant 0 : index
    %163 = vector.load %arg5[%c0_28, %c0_29] : memref<1x24xf32, #tpu.memory_space<vmem>>, vector<1x24xf32>
    %164 = vector.broadcast %163 : vector<1x24xf32> to vector<8x24xf32>
    %165 = arith.addf %162, %164 : vector<8x24xf32>
    %c0_30 = arith.constant 0 : index
    %c0_31 = arith.constant 0 : index
    %166 = vector.load %arg6[%c0_30, %c0_31] : memref<8x24xf32, #tpu.memory_space<vmem>>, vector<8x24xf32>
    tpu.vector_store %arg6[%c0_30, %c0_31], %165 {strides = array<i32>} : memref<8x24xf32, #tpu.memory_space<vmem>>, vector<8x24xf32>,
    return
  }
}

</mosaic_0001>

<llo_original>
// kernel: tpu_custom_call.1
$region0: #{tpu_custom_call.1}
  #allocation0 [shape = 'u32[]', space=smem, size = 0x4, offset = 0x4, fixed_abs, tag = 'smem constant byte address 0x4 - core index']
  #allocation1 [shape = 'u32[72,128]{1,0:T(1,128)}', space=vmem, size = 0x9000, scoped, tag = 'internal scratch']
  %s0 = inlined_call_operand.vmem [shape: f32[64,1], index: 0, kind: input, shape index: {}]
  %s1 = inlined_call_operand.vmem [shape: f32[1,128], index: 1, kind: input, shape index: {}]
  %s2 = inlined_call_operand.vmem [shape: f32[32,128], index: 2, kind: input, shape index: {}]
  %s3 = inlined_call_operand.vmem [shape: f32[1,128], index: 3, kind: input, shape index: {}]
  %s4 = inlined_call_operand.vmem [shape: f32[32,24], index: 4, kind: input, shape index: {}]
  %s5 = inlined_call_operand.vmem [shape: f32[1,24], index: 5, kind: input, shape index: {}]
  %s6 = inlined_call_operand.hbm [shape: f32[8,24], index: 6, kind: output, shape index: {}]
  %s7 = sld [smem:[#allocation0]]
  $region34: #{tpu_custom_call.1} parent=0
    _
  %s9 = ssub.s32 1, %s7
  %s10 = scalar_select 0, %s9, %s7
  $region1: #{tpu_custom_call.1} parent=0
    #allocation2 [shape = 'u8[4096]{0}', space=vmem, size = 0x1000, scoped, tag = 'output window, operand 0, single buffered']
    #allocation3 [shape = 's32[1]{0}', space=sflag, size = 0x4, scoped, tag = 'scoped memory for tpu_custom_call.1']
    %11 = vsyncpa [#allocation3], 0
    // Predicated region
    $region2: #{tpu_custom_call.1} parent=1 // pred_check
      _
    $region3: #{tpu_custom_call.1} parent=1 // pred_check_branch
      %13 = sbr.rel (0) target = $region5
    $region4: #{tpu_custom_call.1} parent=1 // pred_region
      _
    $region5: #{tpu_custom_call.1} parent=1 // pred_fallthru
      _
    // Predicated region
    $region6: #{tpu_custom_call.1} parent=1 // pred_check
      _
    $region7: #{tpu_custom_call.1} parent=1 // pred_check_branch
      %15 = sbr.rel (0) target = $region9
    $region8: #{tpu_custom_call.1} parent=1 // pred_region
      _
    $region9: #{tpu_custom_call.1} parent=1 // pred_fallthru
      _
    // Predicated region
    $region10: #{tpu_custom_call.1} parent=1 // pred_check
      _
    $region11: #{tpu_custom_call.1} parent=1 // pred_check_branch
      %17 = sbr.rel (0) target = $region13
    $region12: #{tpu_custom_call.1} parent=1 // pred_region
      _
    $region13: #{tpu_custom_call.1} parent=1 // pred_fallthru
      _
    // Predicated region
    $region14: #{tpu_custom_call.1} parent=1 // pred_check
      _
    $region15: #{tpu_custom_call.1} parent=1 // pred_check_branch
      %19 = sbr.rel (0) target = $region17
    $region16: #{tpu_custom_call.1} parent=1 // pred_region
      _
    $region17: #{tpu_custom_call.1} parent=1 // pred_fallthru
      _
    // Predicated region
    $region18: #{tpu_custom_call.1} parent=1 // pred_check
      _
    $region19: #{tpu_custom_call.1} parent=1 // pred_check_branch
      %21 = sbr.rel (0) target = $region21
    $region20: #{tpu_custom_call.1} parent=1 // pred_region
      _
    $region21: #{tpu_custom_call.1} parent=1 // pred_fallthru
      _
    // Predicated region
    $region22: #{tpu_custom_call.1} parent=1 // pred_check
      _
    $region23: #{tpu_custom_call.1} parent=1 // pred_check_branch
      %23 = sbr.rel (0) target = $region25
    $region24: #{tpu_custom_call.1} parent=1 // pred_region
      _
    $region25: #{tpu_custom_call.1} parent=1 // pred_fallthru
      _
    %v24 = vld [vmem:[%s0] sm:$0xff]
    %v25 = vld [vmem:[%s0 + $0x8] sm:$0xff]
    %v26 = vld [vmem:[%s0 + $0x10] sm:$0xff]
    %v27 = vld [vmem:[%s0 + $0x18] sm:$0xff]
    %v28 = vld [vmem:[%s0 + $0x20] sm:$0xff]
    %v29 = vld [vmem:[%s0 + $0x28] sm:$0xff]
    %v30 = vld [vmem:[%s0 + $0x30] sm:$0xff]
    %v31 = vld [vmem:[%s0 + $0x38] sm:$0xff]
    %v32 = vld [vmem:[%s1] sm:$0x1]
    %v33 = vld [vmem:[%s3] sm:$0x1]
    %v35 = vperm.slane %v33, 0
    %vm37 = vcmask 7168
    %v39 = vsel %vm37, %v24, 0
    %v42 = vsel %vm37, %v25, 0
    %v45 = vsel %vm37, %v26, 0
    %v48 = vsel %vm37, %v27, 0
    %v51 = vsel %vm37, %v28, 0
    %v54 = vsel %vm37, %v29, 0
    %v57 = vsel %vm37, %v30, 0
    %v60 = vsel %vm37, %v31, 0
    %vm62 = vcmask 1040384
    %v64 = vsel %vm62, %v32, 0
    %66 = vmatpush.msra.mxu0 0.0
    %67 = vmatpush.msra.mxu0 0.0
    %68 = vmatpush.msra.mxu0 0.0
    %69 = vmatpush.msra.mxu0 0.0
    %70 = vmatpush.msra.mxu0 0.0
    %71 = vmatpush.msra.mxu0 0.0
    %72 = vmatpush.msra.mxu0 0.0
    %73 = vmatpush.msra.mxu0 0.0
    %74 = vmatpush.msra.mxu0 0.0
    %75 = vmatpush.msra.mxu0 0.0
    %76 = vmatpush.msra.mxu0 0.0
    %77 = vmatpush.msra.mxu0 0.0
    %78 = vmatpush.msra.mxu0 0.0
    %79 = vmatpush.msra.mxu0 0.0
    %80 = vmatpush.msra.mxu0 0.0
    %81 = vmatpush.msra.mxu0 %v64
    %82 = vmatmul.f32.gmra.mxu0 %v39
    %v83 = vpop.f32.mrf.mxu0
    %v84 = vadd.f32 %v35, %v83
    %85 = vmatmul.f32.gmra.mxu0 %v42
    %v86 = vpop.f32.mrf.mxu0
    %v87 = vadd.f32 %v35, %v86
    %88 = vmatmul.f32.gmra.mxu0 %v45
    %v89 = vpop.f32.mrf.mxu0
    %v90 = vadd.f32 %v35, %v89
    %91 = vmatmul.f32.gmra.mxu0 %v48
    %v92 = vpop.f32.mrf.mxu0
    %v93 = vadd.f32 %v35, %v92
    %94 = vmatmul.f32.gmra.mxu0 %v51
    %v95 = vpop.f32.mrf.mxu0
    %v96 = vadd.f32 %v35, %v95
    %97 = vmatmul.f32.gmra.mxu0 %v54
    %v98 = vpop.f32.mrf.mxu0
    %v99 = vadd.f32 %v35, %v98
    %100 = vmatmul.f32.gmra.mxu0 %v57
    %v101 = vpop.f32.mrf.mxu0
    %v102 = vadd.f32 %v35, %v101
    %103 = vmatmul.f32.gmra.mxu0 %v60
    %v104 = vpop.f32.mrf.mxu0
    %v105 = vadd.f32 %v35, %v104
    %106 = vdwg.mxu0
    %v107 = vld [vmem:[%s2] sm:$0xff]
    %v108 = vld [vmem:[%s2 + $0x8] sm:$0xff]
    %v109 = vld [vmem:[%s2 + $0x10] sm:$0xff]
    %v110 = vld [vmem:[%s2 + $0x18] sm:$0xff]
    %vm111 = vcmask 261120
    %v113 = vsel %vm111, 0.0, 0
    %115 = vmatpush.msra.mxu0 0.0
    %116 = vmatpush.msra.mxu0 0.0
    %117 = vmatpush.msra.mxu0 0.0
    %118 = vmatpush.msra.mxu0 0.0
    %119 = vmatpush.msra.mxu0 0.0
    %120 = vmatpush.msra.mxu0 0.0
    %121 = vmatpush.msra.mxu0 0.0
    %122 = vmatpush.msra.mxu0 0.0
    %123 = vmatpush.msra.mxu0 0.0
    %124 = vmatpush.msra.mxu0 0.0
    %125 = vmatpush.msra.mxu0 0.0
    %126 = vmatpush.msra.mxu0 0.0
    %127 = vmatpush.msra.mxu0 %v110
    %128 = vmatpush.msra.mxu0 %v109
    %129 = vmatpush.msra.mxu0 %v108
    %130 = vmatpush.msra.mxu0 %v107
    %131 = vmatmul.f32.gmra.mxu0 %v113
    %v132 = vpop.f32.mrf.mxu0
    %v133 = vadd.f32 0.0, %v132
    %134 = vdwg.mxu0
    %v135 = vadd.f32 %v84, %v133
    %v136 = vxor.u32 %v135, 2147483648
    %v137 = vmul.f32 %v136, 1.442695
    %v138 = vpow.pop %v137
    %v139 = vadd.f32 %v138, 1.0
    %v140 = vrcp.pop %v139
    %v141 = vmul.f32 %v139, %v140
    %v142 = vsub.f32 1.0, %v141
    %v143 = vmul.f32 %v140, %v142
    %v144 = vadd.f32 %v140, %v143
    %vm145 = vweird.f32 %v139
    %vm146 = vweird.f32 %v140
    %vm147 = vmor %vm145, %vm146
    %v148 = vsel %vm147, %v140, %v144
    %v149 = vand.u32 2147483647, %v139
    %vm150 = vcmp.eq.f32.partialorder %v149, 8.507059e+37
    %v151 = vand.u32 %v139, 2147483648
    %v152 = vor.u32 1.1754944e-38, %v151
    %v153 = vsel %vm150, %v152, %v148
    %v154 = vmul.f32 1.0, %v153
    %v155 = vtanh.pop %v135
    %v156 = vmul.f32 %v154, 0.0
    %158 = vrot.lane.b32.xlu0 %v155, 32
    %v159 = vpop.permute.xlu0 %158
    %v161 = vmul.f32 %v154, %v159
    %163 = vrot.lane.b32.xlu0 %v161, 32
    %v164 = vpop.permute.xlu0 %163
    %v166 = vadd.f32 %v156, %v164
    %v167 = vtanh.pop %v166
    %169 = vrot.lane.b32.xlu0 %v167, 32
    %v170 = vpop.permute.xlu0 %169
    %v172 = vmul.f32 %v154, %v170
    %174 = vrot.lane.b32.xlu0 %v172, 64
    %v175 = vpop.permute.xlu0 %174
    %v176 = vsel %vm111, %v175, 0
    %178 = vmatpush.msra.mxu0 0.0
    %179 = vmatpush.msra.mxu0 0.0
    %180 = vmatpush.msra.mxu0 0.0
    %181 = vmatpush.msra.mxu0 0.0
    %182 = vmatpush.msra.mxu0 0.0
    %183 = vmatpush.msra.mxu0 0.0
    %184 = vmatpush.msra.mxu0 0.0
    %185 = vmatpush.msra.mxu0 0.0
    %186 = vmatpush.msra.mxu0 0.0
    %187 = vmatpush.msra.mxu0 0.0
    %188 = vmatpush.msra.mxu0 0.0
    %189 = vmatpush.msra.mxu0 0.0
    %190 = vmatpush.msra.mxu0 %v110
    %191 = vmatpush.msra.mxu0 %v109
    %192 = vmatpush.msra.mxu0 %v108
    %193 = vmatpush.msra.mxu0 %v107
    %194 = vmatmul.f32.gmra.mxu0 %v176
    %v195 = vpop.f32.mrf.mxu0
    %v196 = vadd.f32 0.0, %v195
    %197 = vdwg.mxu0
    %v198 = vadd.f32 %v87, %v196
    %v199 = vxor.u32 %v198, 2147483648
    %v200 = vmul.f32 %v199, 1.442695
    %v201 = vpow.pop %v200
    %v202 = vadd.f32 %v201, 1.0
    %v203 = vrcp.pop %v202
    %v204 = vmul.f32 %v202, %v203
    %v205 = vsub.f32 1.0, %v204
    %v206 = vmul.f32 %v203, %v205
    %v207 = vadd.f32 %v203, %v206
    %vm208 = vweird.f32 %v202
    %vm209 = vweird.f32 %v203
    %vm210 = vmor %vm208, %vm209
    %v211 = vsel %vm210, %v203, %v207
    %v212 = vand.u32 2147483647, %v202
    %vm213 = vcmp.eq.f32.partialorder %v212, 8.507059e+37
    %v214 = vand.u32 %v202, 2147483648
    %v215 = vor.u32 1.1754944e-38, %v214
    %v216 = vsel %vm213, %v215, %v211
    %v217 = vmul.f32 1.0, %v216
    %v218 = vtanh.pop %v198
    %v219 = vmul.f32 %v217, %v166
    %221 = vrot.lane.b32.xlu0 %v218, 32
    %v222 = vpop.permute.xlu0 %221
    %v224 = vmul.f32 %v217, %v222
    %226 = vrot.lane.b32.xlu0 %v224, 32
    %v227 = vpop.permute.xlu0 %226
    %v229 = vadd.f32 %v219, %v227
    %v230 = vtanh.pop %v229
    %232 = vrot.lane.b32.xlu0 %v230, 32
    %v233 = vpop.permute.xlu0 %232
    %v235 = vmul.f32 %v217, %v233
    %237 = vrot.lane.b32.xlu0 %v235, 64
    %v238 = vpop.permute.xlu0 %237
    %v239 = vsel %vm111, %v238, 0
    %241 = vmatpush.msra.mxu0 0.0
    %242 = vmatpush.msra.mxu0 0.0
    %243 = vmatpush.msra.mxu0 0.0
    %244 = vmatpush.msra.mxu0 0.0
    %245 = vmatpush.msra.mxu0 0.0
    %246 = vmatpush.msra.mxu0 0.0
    %247 = vmatpush.msra.mxu0 0.0
    %248 = vmatpush.msra.mxu0 0.0
    %249 = vmatpush.msra.mxu0 0.0
    %250 = vmatpush.msra.mxu0 0.0
    %251 = vmatpush.msra.mxu0 0.0
    %252 = vmatpush.msra.mxu0 0.0
    %253 = vmatpush.msra.mxu0 %v110
    %254 = vmatpush.msra.mxu0 %v109
    %255 = vmatpush.msra.mxu0 %v108
    %256 = vmatpush.msra.mxu0 %v107
    %257 = vmatmul.f32.gmra.mxu0 %v239
    %v258 = vpop.f32.mrf.mxu0
    %v259 = vadd.f32 0.0, %v258
    %260 = vdwg.mxu0
    %v261 = vadd.f32 %v90, %v259
    %v262 = vxor.u32 %v261, 2147483648
    %v263 = vmul.f32 %v262, 1.442695
    %v264 = vpow.pop %v263
    %v265 = vadd.f32 %v264, 1.0
    %v266 = vrcp.pop %v265
    %v267 = vmul.f32 %v265, %v266
    %v268 = vsub.f32 1.0, %v267
    %v269 = vmul.f32 %v266, %v268
    %v270 = vadd.f32 %v266, %v269
    %vm271 = vweird.f32 %v265
    %vm272 = vweird.f32 %v266
    %vm273 = vmor %vm271, %vm272
    %v274 = vsel %vm273, %v266, %v270
    %v275 = vand.u32 2147483647, %v265
    %vm276 = vcmp.eq.f32.partialorder %v275, 8.507059e+37
    %v277 = vand.u32 %v265, 2147483648
    %v278 = vor.u32 1.1754944e-38, %v277
    %v279 = vsel %vm276, %v278, %v274
    %v280 = vmul.f32 1.0, %v279
    %v281 = vtanh.pop %v261
    %v282 = vmul.f32 %v280, %v229
    %284 = vrot.lane.b32.xlu0 %v281, 32
    %v285 = vpop.permute.xlu0 %284
    %v287 = vmul.f32 %v280, %v285
    %289 = vrot.lane.b32.xlu0 %v287, 32
    %v290 = vpop.permute.xlu0 %289
    %v292 = vadd.f32 %v282, %v290
    %v293 = vtanh.pop %v292
    %295 = vrot.lane.b32.xlu0 %v293, 32
    %v296 = vpop.permute.xlu0 %295
    %v298 = vmul.f32 %v280, %v296
    %300 = vrot.lane.b32.xlu0 %v298, 64
    %v301 = vpop.permute.xlu0 %300
    %v302 = vsel %vm111, %v301, 0
    %304 = vmatpush.msra.mxu0 0.0
    %305 = vmatpush.msra.mxu0 0.0
    %306 = vmatpush.msra.mxu0 0.0
    %307 = vmatpush.msra.mxu0 0.0
    %308 = vmatpush.msra.mxu0 0.0
    %309 = vmatpush.msra.mxu0 0.0
    %310 = vmatpush.msra.mxu0 0.0
    %311 = vmatpush.msra.mxu0 0.0
    %312 = vmatpush.msra.mxu0 0.0
    %313 = vmatpush.msra.mxu0 0.0
    %314 = vmatpush.msra.mxu0 0.0
    %315 = vmatpush.msra.mxu0 0.0
    %316 = vmatpush.msra.mxu0 %v110
    %317 = vmatpush.msra.mxu0 %v109
    %318 = vmatpush.msra.mxu0 %v108
    %319 = vmatpush.msra.mxu0 %v107
    %320 = vmatmul.f32.gmra.mxu0 %v302
    %v321 = vpop.f32.mrf.mxu0
    %v322 = vadd.f32 0.0, %v321
    %323 = vdwg.mxu0
    %v324 = vadd.f32 %v93, %v322
    %v325 = vxor.u32 %v324, 2147483648
    %v326 = vmul.f32 %v325, 1.442695
    %v327 = vpow.pop %v326
    %v328 = vadd.f32 %v327, 1.0
    %v329 = vrcp.pop %v328
    %v330 = vmul.f32 %v328, %v329
    %v331 = vsub.f32 1.0, %v330
    %v332 = vmul.f32 %v329, %v331
    %v333 = vadd.f32 %v329, %v332
    %vm334 = vweird.f32 %v328
    %vm335 = vweird.f32 %v329
    %vm336 = vmor %vm334, %vm335
    %v337 = vsel %vm336, %v329, %v333
    %v338 = vand.u32 2147483647, %v328
    %vm339 = vcmp.eq.f32.partialorder %v338, 8.507059e+37
    %v340 = vand.u32 %v328, 2147483648
    %v341 = vor.u32 1.1754944e-38, %v340
    %v342 = vsel %vm339, %v341, %v337
    %v343 = vmul.f32 1.0, %v342
    %v344 = vtanh.pop %v324
    %v345 = vmul.f32 %v343, %v292
    %347 = vrot.lane.b32.xlu0 %v344, 32
    %v348 = vpop.permute.xlu0 %347
    %v350 = vmul.f32 %v343, %v348
    %352 = vrot.lane.b32.xlu0 %v350, 32
    %v353 = vpop.permute.xlu0 %352
    %v355 = vadd.f32 %v345, %v353
    %v356 = vtanh.pop %v355
    %358 = vrot.lane.b32.xlu0 %v356, 32
    %v359 = vpop.permute.xlu0 %358
    %v361 = vmul.f32 %v343, %v359
    %363 = vrot.lane.b32.xlu0 %v361, 64
    %v364 = vpop.permute.xlu0 %363
    %v365 = vsel %vm111, %v364, 0
    %367 = vmatpush.msra.mxu0 0.0
    %368 = vmatpush.msra.mxu0 0.0
    %369 = vmatpush.msra.mxu0 0.0
    %370 = vmatpush.msra.mxu0 0.0
    %371 = vmatpush.msra.mxu0 0.0
    %372 = vmatpush.msra.mxu0 0.0
    %373 = vmatpush.msra.mxu0 0.0
    %374 = vmatpush.msra.mxu0 0.0
    %375 = vmatpush.msra.mxu0 0.0
    %376 = vmatpush.msra.mxu0 0.0
    %377 = vmatpush.msra.mxu0 0.0
    %378 = vmatpush.msra.mxu0 0.0
    %379 = vmatpush.msra.mxu0 %v110
    %380 = vmatpush.msra.mxu0 %v109
    %381 = vmatpush.msra.mxu0 %v108
    %382 = vmatpush.msra.mxu0 %v107
    %383 = vmatmul.f32.gmra.mxu0 %v365
    %v384 = vpop.f32.mrf.mxu0
    %v385 = vadd.f32 0.0, %v384
    %386 = vdwg.mxu0
    %v387 = vadd.f32 %v96, %v385
    %v388 = vxor.u32 %v387, 2147483648
    %v389 = vmul.f32 %v388, 1.442695
    %v390 = vpow.pop %v389
    %v391 = vadd.f32 %v390, 1.0
    %v392 = vrcp.pop %v391
    %v393 = vmul.f32 %v391, %v392
    %v394 = vsub.f32 1.0, %v393
    %v395 = vmul.f32 %v392, %v394
    %v396 = vadd.f32 %v392, %v395
    %vm397 = vweird.f32 %v391
    %vm398 = vweird.f32 %v392
    %vm399 = vmor %vm397, %vm398
    %v400 = vsel %vm399, %v392, %v396
    %v401 = vand.u32 2147483647, %v391
    %vm402 = vcmp.eq.f32.partialorder %v401, 8.507059e+37
    %v403 = vand.u32 %v391, 2147483648
    %v404 = vor.u32 1.1754944e-38, %v403
    %v405 = vsel %vm402, %v404, %v400
    %v406 = vmul.f32 1.0, %v405
    %v407 = vtanh.pop %v387
    %v408 = vmul.f32 %v406, %v355
    %410 = vrot.lane.b32.xlu0 %v407, 32
    %v411 = vpop.permute.xlu0 %410
    %v413 = vmul.f32 %v406, %v411
    %415 = vrot.lane.b32.xlu0 %v413, 32
    %v416 = vpop.permute.xlu0 %415
    %v418 = vadd.f32 %v408, %v416
    %v419 = vtanh.pop %v418
    %421 = vrot.lane.b32.xlu0 %v419, 32
    %v422 = vpop.permute.xlu0 %421
    %v424 = vmul.f32 %v406, %v422
    %426 = vrot.lane.b32.xlu0 %v424, 64
    %v427 = vpop.permute.xlu0 %426
    %v428 = vsel %vm111, %v427, 0
    %430 = vmatpush.msra.mxu0 0.0
    %431 = vmatpush.msra.mxu0 0.0
    %432 = vmatpush.msra.mxu0 0.0
    %433 = vmatpush.msra.mxu0 0.0
    %434 = vmatpush.msra.mxu0 0.0
    %435 = vmatpush.msra.mxu0 0.0
    %436 = vmatpush.msra.mxu0 0.0
    %437 = vmatpush.msra.mxu0 0.0
    %438 = vmatpush.msra.mxu0 0.0
    %439 = vmatpush.msra.mxu0 0.0
    %440 = vmatpush.msra.mxu0 0.0
    %441 = vmatpush.msra.mxu0 0.0
    %442 = vmatpush.msra.mxu0 %v110
    %443 = vmatpush.msra.mxu0 %v109
    %444 = vmatpush.msra.mxu0 %v108
    %445 = vmatpush.msra.mxu0 %v107
    %446 = vmatmul.f32.gmra.mxu0 %v428
    %v447 = vpop.f32.mrf.mxu0
    %v448 = vadd.f32 0.0, %v447
    %449 = vdwg.mxu0
    %v450 = vadd.f32 %v99, %v448
    %v451 = vxor.u32 %v450, 2147483648
    %v452 = vmul.f32 %v451, 1.442695
    %v453 = vpow.pop %v452
    %v454 = vadd.f32 %v453, 1.0
    %v455 = vrcp.pop %v454
    %v456 = vmul.f32 %v454, %v455
    %v457 = vsub.f32 1.0, %v456
    %v458 = vmul.f32 %v455, %v457
    %v459 = vadd.f32 %v455, %v458
    %vm460 = vweird.f32 %v454
    %vm461 = vweird.f32 %v455
    %vm462 = vmor %vm460, %vm461
    %v463 = vsel %vm462, %v455, %v459
    %v464 = vand.u32 2147483647, %v454
    %vm465 = vcmp.eq.f32.partialorder %v464, 8.507059e+37
    %v466 = vand.u32 %v454, 2147483648
    %v467 = vor.u32 1.1754944e-38, %v466
    %v468 = vsel %vm465, %v467, %v463
    %v469 = vmul.f32 1.0, %v468
    %v470 = vtanh.pop %v450
    %v471 = vmul.f32 %v469, %v418
    %473 = vrot.lane.b32.xlu0 %v470, 32
    %v474 = vpop.permute.xlu0 %473
    %v476 = vmul.f32 %v469, %v474
    %478 = vrot.lane.b32.xlu0 %v476, 32
    %v479 = vpop.permute.xlu0 %478
    %v481 = vadd.f32 %v471, %v479
    %v482 = vtanh.pop %v481
    %484 = vrot.lane.b32.xlu0 %v482, 32
    %v485 = vpop.permute.xlu0 %484
    %v487 = vmul.f32 %v469, %v485
    %489 = vrot.lane.b32.xlu0 %v487, 64
    %v490 = vpop.permute.xlu0 %489
    %v491 = vsel %vm111, %v490, 0
    %493 = vmatpush.msra.mxu0 0.0
    %494 = vmatpush.msra.mxu0 0.0
    %495 = vmatpush.msra.mxu0 0.0
    %496 = vmatpush.msra.mxu0 0.0
    %497 = vmatpush.msra.mxu0 0.0
    %498 = vmatpush.msra.mxu0 0.0
    %499 = vmatpush.msra.mxu0 0.0
    %500 = vmatpush.msra.mxu0 0.0
    %501 = vmatpush.msra.mxu0 0.0
    %502 = vmatpush.msra.mxu0 0.0
    %503 = vmatpush.msra.mxu0 0.0
    %504 = vmatpush.msra.mxu0 0.0
    %505 = vmatpush.msra.mxu0 %v110
    %506 = vmatpush.msra.mxu0 %v109
    %507 = vmatpush.msra.mxu0 %v108
    %508 = vmatpush.msra.mxu0 %v107
    %509 = vmatmul.f32.gmra.mxu0 %v491
    %v510 = vpop.f32.mrf.mxu0
    %v511 = vadd.f32 0.0, %v510
    %512 = vdwg.mxu0
    %v513 = vadd.f32 %v102, %v511
    %v514 = vxor.u32 %v513, 2147483648
    %v515 = vmul.f32 %v514, 1.442695
    %v516 = vpow.pop %v515
    %v517 = vadd.f32 %v516, 1.0
    %v518 = vrcp.pop %v517
    %v519 = vmul.f32 %v517, %v518
    %v520 = vsub.f32 1.0, %v519
    %v521 = vmul.f32 %v518, %v520
    %v522 = vadd.f32 %v518, %v521
    %vm523 = vweird.f32 %v517
    %vm524 = vweird.f32 %v518
    %vm525 = vmor %vm523, %vm524
    %v526 = vsel %vm525, %v518, %v522
    %v527 = vand.u32 2147483647, %v517
    %vm528 = vcmp.eq.f32.partialorder %v527, 8.507059e+37
    %v529 = vand.u32 %v517, 2147483648
    %v530 = vor.u32 1.1754944e-38, %v529
    %v531 = vsel %vm528, %v530, %v526
    %v532 = vmul.f32 1.0, %v531
    %v533 = vtanh.pop %v513
    %v534 = vmul.f32 %v532, %v481
    %536 = vrot.lane.b32.xlu0 %v533, 32
    %v537 = vpop.permute.xlu0 %536
    %v539 = vmul.f32 %v532, %v537
    %541 = vrot.lane.b32.xlu0 %v539, 32
    %v542 = vpop.permute.xlu0 %541
    %v544 = vadd.f32 %v534, %v542
    %v545 = vtanh.pop %v544
    %547 = vrot.lane.b32.xlu0 %v545, 32
    %v548 = vpop.permute.xlu0 %547
    %v550 = vmul.f32 %v532, %v548
    %552 = vrot.lane.b32.xlu0 %v550, 64
    %v553 = vpop.permute.xlu0 %552
    %v554 = vsel %vm111, %v553, 0
    %556 = vmatpush.msra.mxu0 0.0
    %557 = vmatpush.msra.mxu0 0.0
    %558 = vmatpush.msra.mxu0 0.0
    %559 = vmatpush.msra.mxu0 0.0
    %560 = vmatpush.msra.mxu0 0.0
    %561 = vmatpush.msra.mxu0 0.0
    %562 = vmatpush.msra.mxu0 0.0
    %563 = vmatpush.msra.mxu0 0.0
    %564 = vmatpush.msra.mxu0 0.0
    %565 = vmatpush.msra.mxu0 0.0
    %566 = vmatpush.msra.mxu0 0.0
    %567 = vmatpush.msra.mxu0 0.0
    %568 = vmatpush.msra.mxu0 %v110
    %569 = vmatpush.msra.mxu0 %v109
    %570 = vmatpush.msra.mxu0 %v108
    %571 = vmatpush.msra.mxu0 %v107
    %572 = vmatmul.f32.gmra.mxu0 %v554
    %v573 = vpop.f32.mrf.mxu0
    %v574 = vadd.f32 0.0, %v573
    %575 = vdwg.mxu0
    %v576 = vadd.f32 %v105, %v574
    %v577 = vxor.u32 %v576, 2147483648
    %v578 = vmul.f32 %v577, 1.442695
    %v579 = vpow.pop %v578
    %v580 = vadd.f32 %v579, 1.0
    %v581 = vrcp.pop %v580
    %v582 = vmul.f32 %v580, %v581
    %v583 = vsub.f32 1.0, %v582
    %v584 = vmul.f32 %v581, %v583
    %v585 = vadd.f32 %v581, %v584
    %vm586 = vweird.f32 %v580
    %vm587 = vweird.f32 %v581
    %vm588 = vmor %vm586, %vm587
    %v589 = vsel %vm588, %v581, %v585
    %v590 = vand.u32 2147483647, %v580
    %vm591 = vcmp.eq.f32.partialorder %v590, 8.507059e+37
    %v592 = vand.u32 %v580, 2147483648
    %v593 = vor.u32 1.1754944e-38, %v592
    %v594 = vsel %vm591, %v593, %v589
    %v595 = vmul.f32 1.0, %v594
    %v596 = vtanh.pop %v576
    %v597 = vmul.f32 %v595, %v544
    %599 = vrot.lane.b32.xlu0 %v596, 32
    %v600 = vpop.permute.xlu0 %599
    %v602 = vmul.f32 %v595, %v600
    %604 = vrot.lane.b32.xlu0 %v602, 32
    %v605 = vpop.permute.xlu0 %604
    %v607 = vadd.f32 %v597, %v605
    %v608 = vtanh.pop %v607
    %610 = vrot.lane.b32.xlu0 %v608, 32
    %v611 = vpop.permute.xlu0 %610
    %v613 = vmul.f32 %v595, %v611
    %v614 = vld [vmem:[%s4] sm:$0xff]
    %v615 = vld [vmem:[%s4 + $0x8] sm:$0xff]
    %v616 = vld [vmem:[%s4 + $0x10] sm:$0xff]
    %v617 = vld [vmem:[%s4 + $0x18] sm:$0xff]
    %v618 = vld [vmem:[%s5] sm:$0x1]
    %v620 = vperm.slane %v618, 0
    %623 = vrot.lane.b32.xlu0 %v613, 64
    %v624 = vpop.permute.xlu0 %623
    %v625 = vsel %vm111, %v624, 0
    %627 = vmatpush.msra.mxu0 0.0
    %628 = vmatpush.msra.mxu0 0.0
    %629 = vmatpush.msra.mxu0 0.0
    %630 = vmatpush.msra.mxu0 0.0
    %631 = vmatpush.msra.mxu0 0.0
    %632 = vmatpush.msra.mxu0 0.0
    %633 = vmatpush.msra.mxu0 0.0
    %634 = vmatpush.msra.mxu0 0.0
    %635 = vmatpush.msra.mxu0 0.0
    %636 = vmatpush.msra.mxu0 0.0
    %637 = vmatpush.msra.mxu0 0.0
    %638 = vmatpush.msra.mxu0 0.0
    %639 = vmatpush.msra.mxu0 %v617
    %640 = vmatpush.msra.mxu0 %v616
    %641 = vmatpush.msra.mxu0 %v615
    %642 = vmatpush.msra.mxu0 %v614
    %643 = vmatmul.f32.gmra.mxu0 %v625
    %v644 = vpop.f32.mrf.mxu0
    %v645 = vadd.f32 %v620, %v644
    %646 = vdwg.mxu0
    %vm647 = vcmask 195584
    %648 = vst.msk [vmem:[#allocation2] sm:$0xff] %vm647, %v645
    // Predicated region
    $region26: #{tpu_custom_call.1} parent=1 // pred_check
      _
    $region27: #{tpu_custom_call.1} parent=1 // pred_check_branch
      %650 = sbr.rel (0) target = $region29
    $region28: #{tpu_custom_call.1} parent=1 // pred_region
      %652 = vsyncadd [#allocation3], 0
      %s654 = sshll.u32 [#allocation2], 4
      %s655 = int_to_ptr.vmem [resolvable:$true] %s654
      %s656 = sshll.u32 %s6, 4
      %s657 = int_to_ptr.hbm [resolvable:$true] %s656
      %659 = dma.vmem_to_hbm [thread:$0]  %s655, 128, %s657, [#allocation3]
    $region29: #{tpu_custom_call.1} parent=1 // pred_fallthru
      _
    // Predicated region
    $region30: #{tpu_custom_call.1} parent=1 // pred_check
      _
    $region31: #{tpu_custom_call.1} parent=1 // pred_check_branch
      %661 = sbr.rel (0) target = $region33
    $region32: #{tpu_custom_call.1} parent=1 // pred_region
      %663 = dma.done [#allocation3], 128
    $region33: #{tpu_custom_call.1} parent=1 // pred_fallthru
      _
    %664 = vsyncpa [#allocation3], 1

</llo_original>
